<compile_context>
chip_gen: v5e
topology: v5e:2x2
jax: 0.10.0
libtpu: 0.0.40
codegen_flags: <defaults>
</compile_context>

<pallas_src>
import functools

import jax
import jax.numpy as jnp
from jax.experimental import pallas as pl
from jax.experimental.pallas import tpu as pltpu


def _mha_kernel(q_ref, k_ref, wk_ref, out_ref, scores_ref, *, inv_scale, mxu_dtype):
    """q_ref: [N, U] bf16 (resident, pre-projected & pre-cast in the wrapper)
       k_ref: [tM, Dk] bf16 (tiled over M)     wk_ref: [Dk, U] bf16 (resident)
       out_ref: [tM, 2U]  = [scores1 @ Q | K]  scores_ref: [tM, N] = scores1 tile."""
    f32 = jnp.float32

    # Key projection for this M-tile: bf16 operands on the MXU, f32 accumulation.
    K = jnp.dot(k_ref[...], wk_ref[...], preferred_element_type=f32)          # [tM, U]

    # Scores directly in [tM, N]: contract both operands on U (A @ B^T on the MXU,
    # no data-movement transpose).  The 1/sqrt(key_dim) scale is folded into K --
    # each K element is scaled exactly once total (vs. rescaling Q every step).
    Ks = (K * inv_scale).astype(mxu_dtype)                                    # [tM, U]
    scores = jax.lax.dot_general(Ks, q_ref[...], (((1,), (1,)), ((), ())),
                                 preferred_element_type=f32)                  # [tM, N]

    # Softmax over the query axis N (dim=1 of the original [1, N, M] tensor),
    # which is the last (lane) axis here.  Elementwise math stays f32.
    m = jnp.max(scores, axis=-1, keepdims=True)
    e = jnp.exp(scores - m)
    denom = jnp.sum(e, axis=-1, keepdims=True)
    p = e * pl.reciprocal(denom, approx=True)                                 # [tM, N]

    # out1 = [scores1 @ Q | K]  (the source uses Q, not V) -- one fused, lane-denser
    # [tM, 2U] store instead of two U-wide stores plus an XLA concat round trip.
    attn = jnp.dot(p.astype(mxu_dtype), q_ref[...], preferred_element_type=f32)  # [tM, U]
    out_ref[...] = jnp.concatenate([attn, K], axis=1).astype(out_ref.dtype)
    scores_ref[...] = p.astype(scores_ref.dtype)


def _pick_block_m(M, N, U, Dk, scores_bytes, out_bytes):
    """M-tile size from a VMEM byte budget that accounts for double-buffered output
    tiles AND the in-kernel f32 softmax temporaries (safe on v7x's 64 MiB VMEM),
    capped at 1024 rows.  Large M is split into >= 2 tiles so both v7x TensorCores
    get work under the parallel grid axis."""
    per_row = (2 * N * scores_bytes        # double-buffered [tm, N] scores output tile
               + 18 * N                    # f32 softmax temporaries (scores, e, p) + bf16 p
               + 2 * (2 * U) * out_bytes   # double-buffered fused [tm, 2U] output tile
               + 6 * U                     # K f32 + scaled bf16 copy
               + 2 * 2 * Dk)               # double-buffered bf16 key tile
    budget = 20 * 1024 * 1024              # well under the 64 MiB vmem_limit on every gen
    tm = max(8, min(1024, (budget // max(per_row, 1)) // 8 * 8))
    if M <= tm:
        if M >= 512:
            # Whole M would fit in one tile; split once so grid_m >= 2 (v7x has two
            # TensorCores sharing the parallel axis).  Tiny problems stay single-tile.
            return -(-((M + 1) // 2) // 8) * 8
        return M
    return tm


def multi_head_attention(query, key, w_query, w_key, *, key_dim,
                         mxu_dtype=jnp.bfloat16, block_m=None,
                         out_dtype=jnp.float32, scores_dtype=jnp.float32):
    """query:[N,Dq] key:[M,Dk] w_query:[Dq,U] w_key:[Dk,U] -> ([M,2U], [M,N]).

    Weights are the nn.Linear(bias=False) weights stored transposed as [in, out].
    Pass out_dtype/scores_dtype = jnp.bfloat16 to halve the dominant HBM writeback
    if downstream tolerates it (default float32 matches the PyTorch module)."""
    N, Dq = query.shape
    M, Dk = key.shape
    U = w_query.shape[1]

    # Hoisted, one-time query projection (bf16 operands, f32 accumulation) and a
    # single cast to the MXU operand dtype; passed to the kernel as a small
    # resident input instead of being recomputed every grid step.
    Q = jnp.dot(query.astype(mxu_dtype), w_query.astype(mxu_dtype),
                preferred_element_type=jnp.float32).astype(mxu_dtype)          # [N, U]
    # One wrapper-side cast instead of per-grid-step VPU casts; halves key's HBM read.
    key_c = key.astype(mxu_dtype)
    wk_c = w_key.astype(mxu_dtype)

    scores_bytes = jnp.dtype(scores_dtype).itemsize
    out_bytes = jnp.dtype(out_dtype).itemsize
    tm = min(block_m, M) if block_m is not None else _pick_block_m(
        M, N, U, Dk, scores_bytes, out_bytes)
    grid_m = pl.cdiv(M, tm)
    inv_scale = 1.0 / (float(key_dim) ** 0.5)

    kernel = functools.partial(_mha_kernel, inv_scale=inv_scale, mxu_dtype=mxu_dtype)

    # Advisory cost estimate: resident inputs (Q, Wk) and hoisted flops counted once.
    mxu_bytes = jnp.dtype(mxu_dtype).itemsize
    flops = 2 * M * U * (Dk + 2 * N)                 # K projection + scores + attn
    bytes_accessed = (M * Dk * mxu_bytes + N * U * mxu_bytes + Dk * U * mxu_bytes
                      + M * 2 * U * out_bytes + M * N * scores_bytes)
    cost = pl.CostEstimate(flops=flops, transcendentals=M * N,
                           bytes_accessed=bytes_accessed)

    out1, scores1 = pl.pallas_call(
        kernel,
        out_shape=(
            jax.ShapeDtypeStruct((M, 2 * U), out_dtype),   # [scores1 @ Q | K]
            jax.ShapeDtypeStruct((M, N), scores_dtype),    # scores1
        ),
        grid=(grid_m,),
        in_specs=[
            pl.BlockSpec((N, U), lambda i: (0, 0)),        # Q (bf16): fully resident
            pl.BlockSpec((tm, Dk), lambda i: (i, 0)),      # key (bf16): tiled over M
            pl.BlockSpec((Dk, U), lambda i: (0, 0)),       # Wk (bf16): resident
        ],
        out_specs=(
            pl.BlockSpec((tm, 2 * U), lambda i: (i, 0)),
            pl.BlockSpec((tm, N), lambda i: (i, 0)),
        ),
        compiler_params=pltpu.CompilerParams(
            # M-tiles are fully independent (softmax reduces along N within a row),
            # so the grid axis shards across v7x's two TensorCores.
            dimension_semantics=("parallel",),
            vmem_limit_bytes=64 * 1024 * 1024,
        ),
        cost_estimate=cost,
    )(Q, key_c, wk_c)

    return out1, scores1


def _reference(query, key, w_query, w_key, key_dim, mxu_dtype=jnp.bfloat16):
    """Pure-JAX reference mirroring the PyTorch forward (num_heads == 1) at the
    kernel's MXU operand precision (bf16 operands, f32 accumulation)."""
    f32 = jnp.float32
    Q = jnp.dot(query.astype(mxu_dtype), w_query.astype(mxu_dtype),
                preferred_element_type=f32).astype(mxu_dtype)
    K = jnp.dot(key.astype(mxu_dtype), w_key.astype(mxu_dtype),
                preferred_element_type=f32)
    inv_scale = 1.0 / (float(key_dim) ** 0.5)
    Ks = (K * inv_scale).astype(mxu_dtype)
    scores_mn = jax.lax.dot_general(Ks, Q, (((1,), (1,)), ((), ())),
                                    preferred_element_type=f32)      # [M, N]
    p = jax.nn.softmax(scores_mn, axis=-1)                           # softmax over query axis
    attn = jnp.dot(p.astype(mxu_dtype), Q, preferred_element_type=f32)
    out1 = jnp.concatenate([attn, K], axis=1)
    return out1, p


def _run_case(name, N, M, query_dim, key_dim, num_units):
    root = jax.random.PRNGKey(0)
    kq, kk, kwq, kwk, kwv = jax.random.split(root, 5)
    query = jax.random.normal(kq, (N, query_dim), dtype=jnp.float32)
    key = jax.random.normal(kk, (M, key_dim), dtype=jnp.float32)
    # Linear(bias=False) weights, stored transposed as [in, out].
    w_query = jax.random.normal(kwq, (query_dim, num_units), dtype=jnp.float32) * 0.1
    w_key = jax.random.normal(kwk, (key_dim, num_units), dtype=jnp.float32) * 0.1
    _w_value = jax.random.normal(kwv, (key_dim, num_units), dtype=jnp.float32) * 0.1  # defined but unused, as in the source

    out1, scores1 = multi_head_attention(query, key, w_query, w_key, key_dim=key_dim)
    jax.block_until_ready((out1, scores1))

    ref_out1, ref_scores1 = _reference(query, key, w_query, w_key, key_dim)
    assert out1.shape == (M, 2 * num_units) and scores1.shape == (M, N), name
    # Tolerance covers the approximate-reciprocal softmax normalization; the
    # reference mirrors the kernel's bf16 MXU operand precision.
    assert jnp.allclose(out1, ref_out1, atol=1e-2, rtol=1e-2), name
    assert jnp.allclose(scores1, ref_scores1, atol=1e-2, rtol=1e-2), name


if __name__ == "__main__":
    # Shapes consistent with the module's forward (num_heads == 1).
    _run_case("single_tile", N=8, M=8, query_dim=16, key_dim=16, num_units=32)
    # Larger case that exercises the M-tiled grid (grid_m = 2, both v7x cores busy).
    _run_case("m_tiled", N=64, M=512, query_dim=16, key_dim=16, num_units=32)
    print("KERNEL_OK")
</pallas_src>

<mosaic_0001>
module attributes {stable_mosaic.version = 11 : i64} {
  func.func @_mha_kernel(%arg0: i32, %arg1: memref<8x32xbf16, #tpu.memory_space<vmem>>, %arg2: memref<8x16xbf16, #tpu.memory_space<vmem>>, %arg3: memref<16x32xbf16, #tpu.memory_space<vmem>>, %arg4: memref<8x64xf32, #tpu.memory_space<vmem>>, %arg5: memref<8x8xf32, #tpu.memory_space<vmem>>) attributes {dimension_semantics = [#tpu.dimension_semantics<parallel>], iteration_bounds = array<i64: 1>, scalar_prefetch = 0 : i64, scratch_operands = 0 : i64, tpu.core_type = #tpu.core_type<tc>, window_params = [{pipeline_mode = #tpu.pipeline_mode<synchronous>, transform_indices = @transform_0, window_bounds = array<i64: 8, 32>}, {transform_indices = @transform_1, window_bounds = array<i64: 8, 16>}, {pipeline_mode = #tpu.pipeline_mode<synchronous>, transform_indices = @transform_2, window_bounds = array<i64: 16, 32>}, {transform_indices = @transform_3, window_bounds = array<i64: 8, 64>}, {transform_indices = @transform_4, window_bounds = array<i64: 8, 8>}]} {
    %c0 = arith.constant 0 : index
    %c0_0 = arith.constant 0 : index
    %0 = vector.load %arg2[%c0, %c0_0] : memref<8x16xbf16, #tpu.memory_space<vmem>>, vector<8x16xbf16>
    %c0_1 = arith.constant 0 : index
    %c0_2 = arith.constant 0 : index
    %1 = vector.load %arg3[%c0_1, %c0_2] : memref<16x32xbf16, #tpu.memory_space<vmem>>, vector<16x32xbf16>
    %cst = arith.constant dense<0.000000e+00> : vector<8x32xf32>
    %2 = tpu.matmul %0, %1, %cst {dimension_numbers = #tpu.dot_dimension_numbers<[1], [0], [0], [1], [0, 0, 1, 1], [], []>} : vector<8x16xbf16>, vector<16x32xbf16>, vector<8x32xf32> -> vector<8x32xf32>
    %cst_3 = arith.constant 2.500000e-01 : f32
    %3 = vector.broadcast %cst_3 : f32 to vector<8x32xf32>
    %4 = arith.mulf %2, %3 : vector<8x32xf32>
    %5 = arith.truncf %4 : vector<8x32xf32> to vector<8x32xbf16>
    %c0_4 = arith.constant 0 : index
    %c0_5 = arith.constant 0 : index
    %6 = vector.load %arg1[%c0_4, %c0_5] : memref<8x32xbf16, #tpu.memory_space<vmem>>, vector<8x32xbf16>
    %cst_6 = arith.constant dense<0.000000e+00> : vector<8x8xf32>
    %7 = tpu.matmul %5, %6, %cst_6 {dimension_numbers = #tpu.dot_dimension_numbers<[1], [1], [0], [0], [0, 0, 1, 0], [], []>} : vector<8x32xbf16>, vector<8x32xbf16>, vector<8x8xf32> -> vector<8x8xf32>
    %cst_7 = arith.constant dense<0xFF800000> : vector<8xf32>
    %8 = vector.multi_reduction <maximumf>, %7, %cst_7 [1] : vector<8x8xf32> to vector<8xf32>
    %9 = vector.shape_cast %8 : vector<8xf32> to vector<8x1xf32>
    %10 = vector.broadcast %9 : vector<8x1xf32> to vector<8x8xf32>
    %11 = arith.subf %7, %10 : vector<8x8xf32>
    %12 = math.exp %11 : vector<8x8xf32>
    %cst_8 = arith.constant dense<0.000000e+00> : vector<8xf32>
    %13 = vector.multi_reduction <add>, %12, %cst_8 [1] : vector<8x8xf32> to vector<8xf32>
    %14 = vector.shape_cast %13 : vector<8xf32> to vector<8x1xf32>
    %15 = tpu.reciprocal %14 {approx = true} : vector<8x1xf32> -> vector<8x1xf32>
    %16 = vector.broadcast %15 : vector<8x1xf32> to vector<8x8xf32>
    %17 = arith.mulf %12, %16 : vector<8x8xf32>
    %18 = arith.truncf %17 : vector<8x8xf32> to vector<8x8xbf16>
    %c0_9 = arith.constant 0 : index
    %c0_10 = arith.constant 0 : index
    %19 = vector.load %arg1[%c0_9, %c0_10] : memref<8x32xbf16, #tpu.memory_space<vmem>>, vector<8x32xbf16>
    %cst_11 = arith.constant dense<0.000000e+00> : vector<8x32xf32>
    %20 = tpu.matmul %18, %19, %cst_11 {dimension_numbers = #tpu.dot_dimension_numbers<[1], [0], [0], [1], [0, 0, 1, 1], [], []>} : vector<8x8xbf16>, vector<8x32xbf16>, vector<8x32xf32> -> vector<8x32xf32>
    %21 = tpu.concatenate %20, %2 in 1 : vector<8x32xf32>, vector<8x32xf32> -> vector<8x64xf32>
    %c0_12 = arith.constant 0 : index
    %c0_13 = arith.constant 0 : index
    %22 = vector.load %arg4[%c0_12, %c0_13] : memref<8x64xf32, #tpu.memory_space<vmem>>, vector<8x64xf32>
    tpu.vector_store %arg4[%c0_12, %c0_13], %21 {strides = array<i32>} : memref<8x64xf32, #tpu.memory_space<vmem>>, vector<8x64xf32>,
    %c0_14 = arith.constant 0 : index
    %c0_15 = arith.constant 0 : index
    %23 = vector.load %arg5[%c0_14, %c0_15] : memref<8x8xf32, #tpu.memory_space<vmem>>, vector<8x8xf32>
    tpu.vector_store %arg5[%c0_14, %c0_15], %17 {strides = array<i32>} : memref<8x8xf32, #tpu.memory_space<vmem>>, vector<8x8xf32>,
    return
  }
  func.func @transform_0(%arg0: i32) -> (i32, i32) {
    %c0_i32 = arith.constant 0 : i32
    %c0_i32_0 = arith.constant 0 : i32
    %c0_i32_1 = arith.constant 0 : i32
    return %c0_i32, %c0_i32_0 : i32, i32
  }
  func.func @transform_1(%arg0: i32) -> (i32, i32) {
    %c0_i32 = arith.constant 0 : i32
    %c0_i32_0 = arith.constant 0 : i32
    return %arg0, %c0_i32 : i32, i32
  }
  func.func @transform_2(%arg0: i32) -> (i32, i32) {
    %c0_i32 = arith.constant 0 : i32
    %c0_i32_0 = arith.constant 0 : i32
    %c0_i32_1 = arith.constant 0 : i32
    return %c0_i32, %c0_i32_0 : i32, i32
  }
  func.func @transform_3(%arg0: i32) -> (i32, i32) {
    %c0_i32 = arith.constant 0 : i32
    %c0_i32_0 = arith.constant 0 : i32
    return %arg0, %c0_i32 : i32, i32
  }
  func.func @transform_4(%arg0: i32) -> (i32, i32) {
    %c0_i32 = arith.constant 0 : i32
    %c0_i32_0 = arith.constant 0 : i32
    return %arg0, %c0_i32 : i32, i32
  }
}

</mosaic_0001>

<llo_original>
// kernel: tpu_custom_call.1
$region0: #{tpu_custom_call.1}
  #allocation0 [shape = 'u32[]', space=smem, size = 0x4, offset = 0x4, fixed_abs, tag = 'smem constant byte address 0x4 - core index']
  #allocation1 [shape = 'u32[72,128]{1,0:T(1,128)}', space=vmem, size = 0x9000, scoped, tag = 'internal scratch']
  %s0 = inlined_call_operand.hbm [shape: bf16[8,32], index: 0, kind: input, shape index: {}]
  %s1 = inlined_call_operand.hbm [shape: bf16[8,16], index: 1, kind: input, shape index: {}]
  %s2 = inlined_call_operand.hbm [shape: bf16[16,32], index: 2, kind: input, shape index: {}]
  %s3 = inlined_call_operand.hbm [shape: f32[8,64], index: 3, kind: output, shape index: {0}]
  %s4 = inlined_call_operand.hbm [shape: f32[8,8], index: 4, kind: output, shape index: {1}]
  %5 = xla_tuple %s3, %s4
  %s6 = sld [smem:[#allocation0]]
  $region42: #{tpu_custom_call.1} parent=0
    _
  %s8 = ssub.s32 1, %s6
  %s9 = scalar_select 0, %s8, %s6
  $region1: #{tpu_custom_call.1} parent=0
    #allocation2 [shape = 'u8[2048]{0}', space=vmem, size = 0x800, scoped, tag = 'input window, operand 0, single buffered']
    #allocation3 [shape = 's32[1]{0}', space=sflag, size = 0x4, scoped, tag = 'scoped memory for tpu_custom_call.1']
    #allocation4 [shape = 's32[1]{0}', space=sflag, size = 0x4, scoped, tag = 'scoped memory for tpu_custom_call.1']
    #allocation5 [shape = 'u8[2048]{0}', space=vmem, size = 0x800, scoped, tag = 'input window, operand 1, single buffered']
    #allocation6 [shape = 's32[1]{0}', space=sflag, size = 0x4, scoped, tag = 'scoped memory for tpu_custom_call.1']
    #allocation7 [shape = 'u8[4096]{0}', space=vmem, size = 0x1000, scoped, tag = 'input window, operand 2, single buffered']
    #allocation8 [shape = 'u8[4096]{0}', space=vmem, size = 0x1000, scoped, tag = 'output window, operand 0, single buffered']
    #allocation9 [shape = 'u8[4096]{0}', space=vmem, size = 0x1000, scoped, tag = 'output window, operand 1, single buffered']
    #allocation10 [shape = 's32[1]{0}', space=sflag, size = 0x4, scoped, tag = 'scoped memory for tpu_custom_call.1']
    %10 = vsyncpa [#allocation3], 0
    %11 = vsyncpa [#allocation6], 0
    %12 = vsyncpa [#allocation4], 0
    %13 = vsyncpa [#allocation10], 0
    // Predicated region
    $region2: #{tpu_custom_call.1} parent=1 // pred_check
      _
    $region3: #{tpu_custom_call.1} parent=1 // pred_check_branch
      %15 = sbr.rel (0) target = $region5
    $region4: #{tpu_custom_call.1} parent=1 // pred_region
      %17 = vsyncadd [#allocation3], 0
      %s19 = sshll.u32 %s0, 4
      %s20 = int_to_ptr.hbm [resolvable:$true] %s19
      %s21 = sshll.u32 [#allocation2], 4
      %s22 = int_to_ptr.vmem [resolvable:$true] %s21
      %24 = dma.hbm_to_vmem [thread:$0]  %s20, 64, %s22, [#allocation3]
    $region5: #{tpu_custom_call.1} parent=1 // pred_fallthru
      _
    // Predicated region
    $region6: #{tpu_custom_call.1} parent=1 // pred_check
      _
    $region7: #{tpu_custom_call.1} parent=1 // pred_check_branch
      %26 = sbr.rel (0) target = $region9
    $region8: #{tpu_custom_call.1} parent=1 // pred_region
      %28 = vsyncadd [#allocation6], 0
      %s30 = sshll.u32 %s1, 4
      %s31 = int_to_ptr.hbm [resolvable:$true] %s30
      %s32 = sshll.u32 [#allocation5], 4
      %s33 = int_to_ptr.vmem [resolvable:$true] %s32
      %35 = dma.hbm_to_vmem [thread:$0]  %s31, 64, %s33, [#allocation6]
    $region9: #{tpu_custom_call.1} parent=1 // pred_fallthru
      _
    // Predicated region
    $region10: #{tpu_custom_call.1} parent=1 // pred_check
      _
    $region11: #{tpu_custom_call.1} parent=1 // pred_check_branch
      %37 = sbr.rel (0) target = $region13
    $region12: #{tpu_custom_call.1} parent=1 // pred_region
      %39 = vsyncadd [#allocation6], 0
      %s40 = sshll.u32 %s2, 4
      %s41 = int_to_ptr.hbm [resolvable:$true] %s40
      %s42 = sshll.u32 [#allocation7], 4
      %s43 = int_to_ptr.vmem [resolvable:$true] %s42
      %48 = dma.hbm_to_vmem [thread:$0]  %s41, 128, %s43, [#allocation6], 64, 64, 4
    $region13: #{tpu_custom_call.1} parent=1 // pred_fallthru
      _
    // Predicated region
    $region14: #{tpu_custom_call.1} parent=1 // pred_check
      _
    $region15: #{tpu_custom_call.1} parent=1 // pred_check_branch
      %50 = sbr.rel (0) target = $region17
    $region16: #{tpu_custom_call.1} parent=1 // pred_region
      %52 = dma.done [#allocation3], 64
    $region17: #{tpu_custom_call.1} parent=1 // pred_fallthru
      _
    // Predicated region
    $region18: #{tpu_custom_call.1} parent=1 // pred_check
      _
    $region19: #{tpu_custom_call.1} parent=1 // pred_check_branch
      %54 = sbr.rel (0) target = $region21
    $region20: #{tpu_custom_call.1} parent=1 // pred_region
      %56 = dma.done [#allocation6], 64
    $region21: #{tpu_custom_call.1} parent=1 // pred_fallthru
      _
    // Predicated region
    $region22: #{tpu_custom_call.1} parent=1 // pred_check
      _
    $region23: #{tpu_custom_call.1} parent=1 // pred_check_branch
      %58 = sbr.rel (0) target = $region25
    $region24: #{tpu_custom_call.1} parent=1 // pred_region
      %60 = dma.done [#allocation6], 128
    $region25: #{tpu_custom_call.1} parent=1 // pred_fallthru
      _
    %v62 = vld [vmem:[#allocation5] sm:$0xf]
    %v63 = vld [vmem:[#allocation7] sm:$0xf]
    %v64 = vld [vmem:[#allocation7 + $0x4] sm:$0xf]
    %v67 = vunpack.c.l.b16 %v63
    %v68 = vunpack.c.l.b16 %v64
    %v69 = vpack.c.b16 %v68, %v67
    %vm71 = vcmask 130048
    %v73 = vsel %vm71, %v62, 0
    %75 = vmatpush.bf16.msra.mxu0 0
    %76 = vmatpush.bf16.msra.mxu0 0
    %77 = vmatpush.bf16.msra.mxu0 0
    %78 = vmatpush.bf16.msra.mxu0 0
    %79 = vmatpush.bf16.msra.mxu0 0
    %80 = vmatpush.bf16.msra.mxu0 0
    %81 = vmatpush.bf16.msra.mxu0 0
    %82 = vmatpush.bf16.msra.mxu0 %v69
    %83 = vmatmul.bf16.gmra.mxu0 %v73
    %v84 = vpop.f32.mrf.mxu0
    %v85 = vadd.f32 0.0, %v84
    %v86 = vpop.f32.mrf.mxu0
    %87 = vdwg.mxu0
    %v88 = vmul.f32 %v85, 0.25
    %v89 = vpack.c.bf16 %v88, %v88
    %v90 = vld [vmem:[#allocation2] sm:$0xf]
    %vm91 = vcmask 261120
    %v93 = vsel %vm91, %v89, 0
    %v96 = vsel %vm91, %v90, 0
    %98 = vmatpush.bf16.xpose.msra.mxu0 0
    %99 = vmatpush.bf16.xpose.msra.mxu0 0
    %100 = vmatpush.bf16.xpose.msra.mxu0 0
    %101 = vmatpush.bf16.xpose.msra.mxu0 0
    %102 = vmatpush.bf16.xpose.msra.mxu0 0
    %103 = vmatpush.bf16.xpose.msra.mxu0 0
    %104 = vmatpush.bf16.xpose.msra.mxu0 0
    %105 = vmatpush.bf16.xpose.msra.mxu0 %v96
    %106 = vmatmul.bf16.gmra.mxu0 %v93
    %v107 = vpop.f32.mrf.mxu0
    %v108 = vadd.f32 0.0, %v107
    %v109 = vpop.f32.mrf.mxu0
    %110 = vdwg.mxu0
    %vm111 = vcmask 64512
    %v112 = vsel %vm111, %v108, -inf
    %113 = vmax.xlane.f32.xlu0 %v112
    %v114 = vpop.xlane.xlu0 %113
    %v115 = vsub.f32 %v108, %v114
    %v116 = vmul.f32 %v115, 1.442695
    %v117 = vpow.pop %v116
    %v118 = vsel %vm111, %v117, 0.0
    %119 = vadd.xlane.f32.xlu0 %v118
    %v120 = vpop.xlane.xlu0 %119
    %v121 = vrcp.pop %v120
    %v122 = vmul.f32 %v117, %v121
    %v123 = vpack.c.bf16 %v122, %v122
    %v125 = vsel %vm111, %v123, 0
    %vm127 = vcmask 1043456
    %v128 = vsel %vm127, %v90, 0
    %130 = vmatpush.bf16.msra.mxu0 0
    %131 = vmatpush.bf16.msra.mxu0 0
    %132 = vmatpush.bf16.msra.mxu0 0
    %133 = vmatpush.bf16.msra.mxu0 0
    %134 = vmatpush.bf16.msra.mxu0 0
    %135 = vmatpush.bf16.msra.mxu0 0
    %136 = vmatpush.bf16.msra.mxu0 0
    %137 = vmatpush.bf16.msra.mxu0 %v128
    %138 = vmatmul.bf16.gmra.mxu0 %v125
    %v139 = vpop.f32.mrf.mxu0
    %v140 = vadd.f32 0.0, %v139
    %v141 = vpop.f32.mrf.mxu0
    %142 = vdwg.mxu0
    %144 = vrot.lane.b32.xlu0 %v85, 32
    %v145 = vpop.permute.xlu0 %144
    %v147 = vsel %vm91, %v140, %v145
    %vm148 = vcmask 523264
    %149 = vst.msk [vmem:[#allocation8] sm:$0xff] %vm148, %v147
    %150 = vst.msk [vmem:[#allocation9] sm:$0xff] %vm111, %v122
    // Predicated region
    $region26: #{tpu_custom_call.1} parent=1 // pred_check
      _
    $region27: #{tpu_custom_call.1} parent=1 // pred_check_branch
      %152 = sbr.rel (0) target = $region29
    $region28: #{tpu_custom_call.1} parent=1 // pred_region
      %154 = vsyncadd [#allocation4], 0
      %s156 = sshll.u32 [#allocation8], 4
      %s157 = int_to_ptr.vmem [resolvable:$true] %s156
      %s158 = sshll.u32 %s3, 4
      %s159 = int_to_ptr.hbm [resolvable:$true] %s158
      %161 = dma.vmem_to_hbm [thread:$0]  %s157, 128, %s159, [#allocation4]
    $region29: #{tpu_custom_call.1} parent=1 // pred_fallthru
      _
    // Predicated region
    $region30: #{tpu_custom_call.1} parent=1 // pred_check
      _
    $region31: #{tpu_custom_call.1} parent=1 // pred_check_branch
      %163 = sbr.rel (0) target = $region33
    $region32: #{tpu_custom_call.1} parent=1 // pred_region
      %165 = vsyncadd [#allocation10], 0
      %s167 = sshll.u32 [#allocation9], 4
      %s168 = int_to_ptr.vmem [resolvable:$true] %s167
      %s169 = sshll.u32 %s4, 4
      %s170 = int_to_ptr.hbm [resolvable:$true] %s169
      %172 = dma.vmem_to_hbm [thread:$0]  %s168, 128, %s170, [#allocation10]
    $region33: #{tpu_custom_call.1} parent=1 // pred_fallthru
      _
    // Predicated region
    $region34: #{tpu_custom_call.1} parent=1 // pred_check
      _
    $region35: #{tpu_custom_call.1} parent=1 // pred_check_branch
      %174 = sbr.rel (0) target = $region37
    $region36: #{tpu_custom_call.1} parent=1 // pred_region
      %176 = dma.done [#allocation4], 128
    $region37: #{tpu_custom_call.1} parent=1 // pred_fallthru
      _
    // Predicated region
    $region38: #{tpu_custom_call.1} parent=1 // pred_check
      _
    $region39: #{tpu_custom_call.1} parent=1 // pred_check_branch
      %178 = sbr.rel (0) target = $region41
    $region40: #{tpu_custom_call.1} parent=1 // pred_region
      %180 = dma.done [#allocation10], 128
    $region41: #{tpu_custom_call.1} parent=1 // pred_fallthru
      _
    %181 = vsyncpa [#allocation3], 1
    %182 = vsyncpa [#allocation6], 1
    %183 = vsyncpa [#allocation4], 1
    %184 = vsyncpa [#allocation10], 1

</llo_original>
